<compile_context>
chip_gen: v7x
topology: tpu7x:2x2x1
jax: 0.10.0
libtpu: 0.0.40
codegen_flags: <defaults>
</compile_context>

<pallas_src>
import functools

import jax
import jax.numpy as jnp
from jax.experimental import pallas as pl
from jax.experimental.pallas import tpu as pltpu


def _gelu(x):
    # tanh-form GELU: ~6 VALU ops + one EUP tanh per element (vs ~15-25 VALU ops
    # for the exact erf polynomial).  ~1e-3 deviation from nn.GELU()'s exact form.
    return jax.nn.gelu(x, approximate=True)


def trait_decoder_kernel(x_ref, w1_ref, b1_ref, w2_ref, b2_ref, w3_ref, b3_ref, o_ref):
    """Fused 3-layer MLP on one batch tile. Weights resident, bf16 MXU, f32 accum."""
    x = x_ref[...].astype(jnp.bfloat16)            # in-kernel cast (no wrapper pass)

    h1 = jnp.dot(x, w1_ref[...], preferred_element_type=jnp.float32) + b1_ref[...]
    h1 = _gelu(h1)                                  # Dropout = identity (eval)

    h2 = jnp.dot(h1.astype(jnp.bfloat16), w2_ref[...],
                 preferred_element_type=jnp.float32) + b2_ref[...]
    h2 = _gelu(h2)                                  # Dropout = identity (eval)

    h3 = jnp.dot(h2.astype(jnp.bfloat16), w3_ref[...],
                 preferred_element_type=jnp.float32) + b3_ref[...]
    o_ref[...] = jax.nn.sigmoid(h3).astype(o_ref.dtype)   # lane-dense (bm, 128) store


def _round_up(n, m):
    return ((n + m - 1) // m) * m


def prepare_params(params):
    """One-time (model-load) weight preparation.

    Casts matmul operands to bf16 and zero-pads the final projection to a
    lane-dense 128-column width so the kernel can do an unmasked vst.  Keeps
    these XLA passes off the per-forward path.
    Returns (prepared_params, num_traits).
    """
    w1, b1, w2, b2, w3, b3 = params
    num_traits = w3.shape[1]
    n_pad = _round_up(num_traits, 128)
    w3p = jnp.zeros((w3.shape[0], n_pad), w3.dtype).at[:, :num_traits].set(w3)
    b3p = jnp.zeros((1, n_pad), b3.dtype).at[:, :num_traits].set(b3)
    prepared = (
        w1.astype(jnp.bfloat16), b1.astype(jnp.float32),
        w2.astype(jnp.bfloat16), b2.astype(jnp.float32),
        w3p.astype(jnp.bfloat16), b3p.astype(jnp.float32),
    )
    return prepared, num_traits


@functools.partial(jax.jit, static_argnames=("num_traits", "block_b"))
def trait_decoder_forward(features, prepared, *, num_traits, block_b=512):
    """features: (B, input_dim) f32 -> (B, num_traits) f32 (eval-mode forward)."""
    w1, b1, w2, b2, w3p, b3p = prepared
    B, D = features.shape
    H1 = w1.shape[1]
    H2 = w2.shape[1]
    n_pad = w3p.shape[1]

    # --- batch tiling ---------------------------------------------------------
    # Big tiles amortize ~0.35 us/grid-step overhead; 16-row granularity matches
    # bf16 sublane packing.  For large batches keep >=2 grid steps so both v7x
    # TensorCores (dimension_semantics="parallel") get work.
    bm = min(block_b, _round_up(B, 16))
    if B >= 32 and pl.cdiv(B, bm) < 2:
        bm = _round_up(pl.cdiv(B, 2), 16)
    Bp = pl.cdiv(B, bm) * bm

    x = features.astype(jnp.float32)
    if Bp != B:
        x = jnp.pad(x, ((0, Bp - B), (0, 0)))
    grid = (Bp // bm,)

    resident = lambda a: pl.BlockSpec(a.shape, lambda i: (0,) * a.ndim)

    cost = pl.CostEstimate(
        flops=2 * Bp * (D * H1 + H1 * H2 + H2 * n_pad),
        transcendentals=Bp * (H1 + H2 + n_pad),
        bytes_accessed=(x.size * 4
                        + (w1.size + w2.size + w3p.size) * 2
                        + (b1.size + b2.size + b3p.size) * 4
                        + Bp * n_pad * 4),
    )

    out_padded = pl.pallas_call(
        trait_decoder_kernel,
        out_shape=jax.ShapeDtypeStruct((Bp, n_pad), jnp.float32),
        grid_spec=pltpu.PrefetchScalarGridSpec(
            num_scalar_prefetch=0,
            grid=grid,
            in_specs=[
                pl.BlockSpec((bm, D), lambda i: (i, 0)),     # x: tiled over batch
                resident(w1), resident(b1),                  # weights/biases resident
                resident(w2), resident(b2),
                resident(w3p), resident(b3p),
            ],
            out_specs=pl.BlockSpec((bm, n_pad), lambda i: (i, 0)),
        ),
        compiler_params=pltpu.CompilerParams(
            dimension_semantics=("parallel",),
            vmem_limit_bytes=32 * 1024 * 1024,
        ),
        cost_estimate=cost,
    )(x, w1, b1, w2, b2, w3p, b3p)

    return out_padded[:B, :num_traits]


def psychological_trait_decoder(features, params, *, block_b=512):
    """Convenience wrapper taking raw (unprepared) params."""
    prepared, num_traits = prepare_params(params)
    return trait_decoder_forward(features, prepared, num_traits=num_traits,
                                 block_b=block_b)


# ------------------------------------------------------------------------------
# Reference / test scaffolding
# ------------------------------------------------------------------------------

def init_params(key, input_dim, num_traits=15):
    """nn.Linear-style U(-1/sqrt(fan_in), 1/sqrt(fan_in)) init.
    Weights stored as (in_features, out_features); biases as (1, out_features)."""
    dims = [(input_dim, 512), (512, 256), (256, num_traits)]
    params = []
    for (fan_in, fan_out) in dims:
        key, kw, kb = jax.random.split(key, 3)
        bound = 1.0 / jnp.sqrt(fan_in)
        w = jax.random.uniform(kw, (fan_in, fan_out), jnp.float32, -bound, bound)
        b = jax.random.uniform(kb, (1, fan_out), jnp.float32, -bound, bound)
        params += [w, b]
    return tuple(params)


def reference_forward_f32(features, params):
    """Pure-JAX f32 reference matching the PyTorch module exactly (erf GELU)."""
    w1, b1, w2, b2, w3, b3 = params
    gelu = lambda x: jax.nn.gelu(x, approximate=False)
    h = gelu(features @ w1 + b1)
    h = gelu(h @ w2 + b2)
    return jax.nn.sigmoid(h @ w3 + b3)


def reference_forward_matched(features, params):
    """Reference matching the kernel's numerics (bf16 operands, f32 acc, tanh GELU)."""
    w1, b1, w2, b2, w3, b3 = params
    bf = jnp.bfloat16
    dot = lambda a, w: jnp.dot(a.astype(bf), w.astype(bf),
                               preferred_element_type=jnp.float32)
    h = _gelu(dot(features, w1) + b1)
    h = _gelu(dot(h, w2) + b2)
    return jax.nn.sigmoid(dot(h, w3) + b3)


if __name__ == "__main__":
    key = jax.random.PRNGKey(0)
    batch, input_dim, num_traits = 8, 64, 15

    k_x, k_p = jax.random.split(key)
    features = jax.random.normal(k_x, (batch, input_dim), jnp.float32)
    params = init_params(k_p, input_dim, num_traits)

    # One-time weight prep (model load), then the jitted Pallas forward.
    prepared, nt = prepare_params(params)
    out = trait_decoder_forward(features, prepared, num_traits=nt)
    out = jax.block_until_ready(out)

    assert out.shape == (batch, num_traits)

    ref_exact = reference_forward_f32(features, params)
    ref_match = reference_forward_matched(features, params)
    # Loose tolerance vs the f32/erf PyTorch-exact reference (bf16 + tanh GELU),
    # tight tolerance vs the numerics-matched reference.
    assert jnp.allclose(out, ref_exact, atol=3e-2, rtol=3e-2)
    assert jnp.allclose(out, ref_match, atol=2e-3, rtol=2e-3)

    print("KERNEL_OK")
</pallas_src>

<mosaic_0001>
module attributes {stable_mosaic.version = 11 : i64} {
  func.func @trait_decoder_kernel(%arg0: i32, %arg1: memref<16x64xf32, #tpu.memory_space<vmem>>, %arg2: memref<64x512xbf16, #tpu.memory_space<vmem>>, %arg3: memref<1x512xf32, #tpu.memory_space<vmem>>, %arg4: memref<512x256xbf16, #tpu.memory_space<vmem>>, %arg5: memref<1x256xf32, #tpu.memory_space<vmem>>, %arg6: memref<256x128xbf16, #tpu.memory_space<vmem>>, %arg7: memref<1x128xf32, #tpu.memory_space<vmem>>, %arg8: memref<16x128xf32, #tpu.memory_space<vmem>>) attributes {dimension_semantics = [#tpu.dimension_semantics<parallel>], iteration_bounds = array<i64: 1>, scalar_prefetch = 0 : i64, scratch_operands = 0 : i64, tpu.core_type = #tpu.core_type<tc>, window_params = [{transform_indices = @transform_0, window_bounds = array<i64: 16, 64>}, {pipeline_mode = #tpu.pipeline_mode<synchronous>, transform_indices = @transform_1, window_bounds = array<i64: 64, 512>}, {pipeline_mode = #tpu.pipeline_mode<synchronous>, transform_indices = @transform_2, window_bounds = array<i64: 1, 512>}, {pipeline_mode = #tpu.pipeline_mode<synchronous>, transform_indices = @transform_3, window_bounds = array<i64: 512, 256>}, {pipeline_mode = #tpu.pipeline_mode<synchronous>, transform_indices = @transform_4, window_bounds = array<i64: 1, 256>}, {pipeline_mode = #tpu.pipeline_mode<synchronous>, transform_indices = @transform_5, window_bounds = array<i64: 256, 128>}, {pipeline_mode = #tpu.pipeline_mode<synchronous>, transform_indices = @transform_6, window_bounds = array<i64: 1, 128>}, {transform_indices = @transform_7, window_bounds = array<i64: 16, 128>}]} {
    %c0 = arith.constant 0 : index
    %c0_0 = arith.constant 0 : index
    %0 = vector.load %arg1[%c0, %c0_0] : memref<16x64xf32, #tpu.memory_space<vmem>>, vector<16x64xf32>
    %1 = arith.truncf %0 : vector<16x64xf32> to vector<16x64xbf16>
    %c0_1 = arith.constant 0 : index
    %c0_2 = arith.constant 0 : index
    %2 = vector.load %arg2[%c0_1, %c0_2] : memref<64x512xbf16, #tpu.memory_space<vmem>>, vector<64x512xbf16>
    %cst = arith.constant dense<0.000000e+00> : vector<16x512xf32>
    %3 = tpu.matmul %1, %2, %cst {dimension_numbers = #tpu.dot_dimension_numbers<[1], [0], [0], [1], [0, 0, 1, 1], [], []>} : vector<16x64xbf16>, vector<64x512xbf16>, vector<16x512xf32> -> vector<16x512xf32>
    %c0_3 = arith.constant 0 : index
    %c0_4 = arith.constant 0 : index
    %4 = vector.load %arg3[%c0_3, %c0_4] : memref<1x512xf32, #tpu.memory_space<vmem>>, vector<1x512xf32>
    %5 = vector.broadcast %4 : vector<1x512xf32> to vector<16x512xf32>
    %6 = arith.addf %3, %5 : vector<16x512xf32>
    %7 = arith.mulf %6, %6 : vector<16x512xf32>
    %8 = arith.mulf %6, %7 : vector<16x512xf32>
    %cst_5 = arith.constant 4.471500e-02 : f32
    %9 = vector.broadcast %cst_5 : f32 to vector<16x512xf32>
    %10 = arith.mulf %9, %8 : vector<16x512xf32>
    %11 = arith.addf %6, %10 : vector<16x512xf32>
    %cst_6 = arith.constant 0.797884583 : f32
    %12 = vector.broadcast %cst_6 : f32 to vector<16x512xf32>
    %13 = arith.mulf %12, %11 : vector<16x512xf32>
    %14 = math.tanh %13 : vector<16x512xf32>
    %cst_7 = arith.constant 1.000000e+00 : f32
    %15 = vector.broadcast %cst_7 : f32 to vector<16x512xf32>
    %16 = arith.addf %15, %14 : vector<16x512xf32>
    %cst_8 = arith.constant 5.000000e-01 : f32
    %17 = vector.broadcast %cst_8 : f32 to vector<16x512xf32>
    %18 = arith.mulf %17, %16 : vector<16x512xf32>
    %19 = arith.mulf %6, %18 : vector<16x512xf32>
    %20 = arith.truncf %19 : vector<16x512xf32> to vector<16x512xbf16>
    %c0_9 = arith.constant 0 : index
    %c0_10 = arith.constant 0 : index
    %21 = vector.load %arg4[%c0_9, %c0_10] : memref<512x256xbf16, #tpu.memory_space<vmem>>, vector<512x256xbf16>
    %cst_11 = arith.constant dense<0.000000e+00> : vector<16x256xf32>
    %22 = tpu.matmul %20, %21, %cst_11 {dimension_numbers = #tpu.dot_dimension_numbers<[1], [0], [0], [1], [0, 0, 1, 1], [], []>} : vector<16x512xbf16>, vector<512x256xbf16>, vector<16x256xf32> -> vector<16x256xf32>
    %c0_12 = arith.constant 0 : index
    %c0_13 = arith.constant 0 : index
    %23 = vector.load %arg5[%c0_12, %c0_13] : memref<1x256xf32, #tpu.memory_space<vmem>>, vector<1x256xf32>
    %24 = vector.broadcast %23 : vector<1x256xf32> to vector<16x256xf32>
    %25 = arith.addf %22, %24 : vector<16x256xf32>
    %26 = arith.mulf %25, %25 : vector<16x256xf32>
    %27 = arith.mulf %25, %26 : vector<16x256xf32>
    %cst_14 = arith.constant 4.471500e-02 : f32
    %28 = vector.broadcast %cst_14 : f32 to vector<16x256xf32>
    %29 = arith.mulf %28, %27 : vector<16x256xf32>
    %30 = arith.addf %25, %29 : vector<16x256xf32>
    %cst_15 = arith.constant 0.797884583 : f32
    %31 = vector.broadcast %cst_15 : f32 to vector<16x256xf32>
    %32 = arith.mulf %31, %30 : vector<16x256xf32>
    %33 = math.tanh %32 : vector<16x256xf32>
    %cst_16 = arith.constant 1.000000e+00 : f32
    %34 = vector.broadcast %cst_16 : f32 to vector<16x256xf32>
    %35 = arith.addf %34, %33 : vector<16x256xf32>
    %cst_17 = arith.constant 5.000000e-01 : f32
    %36 = vector.broadcast %cst_17 : f32 to vector<16x256xf32>
    %37 = arith.mulf %36, %35 : vector<16x256xf32>
    %38 = arith.mulf %25, %37 : vector<16x256xf32>
    %39 = arith.truncf %38 : vector<16x256xf32> to vector<16x256xbf16>
    %c0_18 = arith.constant 0 : index
    %c0_19 = arith.constant 0 : index
    %40 = vector.load %arg6[%c0_18, %c0_19] : memref<256x128xbf16, #tpu.memory_space<vmem>>, vector<256x128xbf16>
    %cst_20 = arith.constant dense<0.000000e+00> : vector<16x128xf32>
    %41 = tpu.matmul %39, %40, %cst_20 {dimension_numbers = #tpu.dot_dimension_numbers<[1], [0], [0], [1], [0, 0, 1, 1], [], []>} : vector<16x256xbf16>, vector<256x128xbf16>, vector<16x128xf32> -> vector<16x128xf32>
    %c0_21 = arith.constant 0 : index
    %c0_22 = arith.constant 0 : index
    %42 = vector.load %arg7[%c0_21, %c0_22] : memref<1x128xf32, #tpu.memory_space<vmem>>, vector<1x128xf32>
    %43 = vector.broadcast %42 : vector<1x128xf32> to vector<16x128xf32>
    %44 = arith.addf %41, %43 : vector<16x128xf32>
    %45 = arith.negf %44 : vector<16x128xf32>
    %46 = math.exp %45 : vector<16x128xf32>
    %cst_23 = arith.constant 1.000000e+00 : f32
    %47 = vector.broadcast %cst_23 : f32 to vector<16x128xf32>
    %48 = arith.addf %47, %46 : vector<16x128xf32>
    %49 = arith.divf %47, %48 : vector<16x128xf32>
    %c0_24 = arith.constant 0 : index
    %c0_25 = arith.constant 0 : index
    %50 = vector.load %arg8[%c0_24, %c0_25] : memref<16x128xf32, #tpu.memory_space<vmem>>, vector<16x128xf32>
    tpu.vector_store %arg8[%c0_24, %c0_25], %49 {strides = array<i32>} : memref<16x128xf32, #tpu.memory_space<vmem>>, vector<16x128xf32>,
    return
  }
  func.func @transform_0(%arg0: i32) -> (i32, i32) {
    %c0_i32 = arith.constant 0 : i32
    %c0_i32_0 = arith.constant 0 : i32
    return %arg0, %c0_i32 : i32, i32
  }
  func.func @transform_1(%arg0: i32) -> (i32, i32) {
    %c0_i32 = arith.constant 0 : i32
    %c0_i32_0 = arith.constant 0 : i32
    %c0_i32_1 = arith.constant 0 : i32
    return %c0_i32, %c0_i32_0 : i32, i32
  }
  func.func @transform_2(%arg0: i32) -> (i32, i32) {
    %c0_i32 = arith.constant 0 : i32
    %c0_i32_0 = arith.constant 0 : i32
    %c0_i32_1 = arith.constant 0 : i32
    return %c0_i32, %c0_i32_0 : i32, i32
  }
  func.func @transform_3(%arg0: i32) -> (i32, i32) {
    %c0_i32 = arith.constant 0 : i32
    %c0_i32_0 = arith.constant 0 : i32
    %c0_i32_1 = arith.constant 0 : i32
    return %c0_i32, %c0_i32_0 : i32, i32
  }
  func.func @transform_4(%arg0: i32) -> (i32, i32) {
    %c0_i32 = arith.constant 0 : i32
    %c0_i32_0 = arith.constant 0 : i32
    %c0_i32_1 = arith.constant 0 : i32
    return %c0_i32, %c0_i32_0 : i32, i32
  }
  func.func @transform_5(%arg0: i32) -> (i32, i32) {
    %c0_i32 = arith.constant 0 : i32
    %c0_i32_0 = arith.constant 0 : i32
    %c0_i32_1 = arith.constant 0 : i32
    return %c0_i32, %c0_i32_0 : i32, i32
  }
  func.func @transform_6(%arg0: i32) -> (i32, i32) {
    %c0_i32 = arith.constant 0 : i32
    %c0_i32_0 = arith.constant 0 : i32
    %c0_i32_1 = arith.constant 0 : i32
    return %c0_i32, %c0_i32_0 : i32, i32
  }
  func.func @transform_7(%arg0: i32) -> (i32, i32) {
    %c0_i32 = arith.constant 0 : i32
    %c0_i32_0 = arith.constant 0 : i32
    return %arg0, %c0_i32 : i32, i32
  }
}

</mosaic_0001>

<llo_original>
// kernel: trait_decoder_forward.1
$region0: #{trait_decoder_forward.1}
  #allocation0 [shape = 'u32[]', space=smem, size = 0x4, offset = 0x4, fixed_abs, tag = 'smem constant byte address 0x4 - core index']
  #allocation1 [shape = 'u32[144,128]{1,0:T(1,128)}', space=vmem, size = 0x12000, scoped, tag = 'internal scratch']
  %s0 = inlined_call_operand.vmem [shape: f32[16,64], index: 0, kind: input, shape index: {}]
  %s1 = inlined_call_operand.hbm [shape: bf16[64,512], index: 1, kind: input, shape index: {}]
  %s2 = inlined_call_operand.vmem [shape: f32[1,512], index: 2, kind: input, shape index: {}]
  %s3 = inlined_call_operand.hbm [shape: bf16[512,256], index: 3, kind: input, shape index: {}]
  %s4 = inlined_call_operand.vmem [shape: f32[1,256], index: 4, kind: input, shape index: {}]
  %s5 = inlined_call_operand.hbm [shape: bf16[256,128], index: 5, kind: input, shape index: {}]
  %s6 = inlined_call_operand.vmem [shape: f32[1,128], index: 6, kind: input, shape index: {}]
  %s7 = inlined_call_operand.vmem [shape: f32[16,128], index: 7, kind: output, shape index: {}]
  %s8 = sld [smem:[#allocation0]]
  $region50: #{trait_decoder_forward.1} parent=0
    _
  %s10 = ssub.s32 1, %s8
  %s11 = scalar_select 0, %s10, %s8
  $region1: #{trait_decoder_forward.1} parent=0
    #allocation2 [shape = 'u8[65536]{0}', space=vmem, size = 0x10000, scoped, tag = 'input window, operand 1, single buffered']
    #allocation3 [shape = 's32[1]{0}', space=sflag, size = 0x4, scoped, tag = 'scoped memory for trait_decoder_forward.1']
    #allocation4 [shape = 'u8[262144]{0}', space=vmem, size = 0x40000, scoped, tag = 'input window, operand 3, single buffered']
    #allocation5 [shape = 's32[1]{0}', space=sflag, size = 0x4, scoped, tag = 'scoped memory for trait_decoder_forward.1']
    #allocation6 [shape = 'u8[65536]{0}', space=vmem, size = 0x10000, scoped, tag = 'input window, operand 5, single buffered']
    %12 = vsyncpa [#allocation3], 0
    %13 = vsyncpa [#allocation5], 0
    // Predicated region
    $region2: #{trait_decoder_forward.1} parent=1 // pred_check
      _
    $region3: #{trait_decoder_forward.1} parent=1 // pred_check_branch
      %15 = sbr.rel (0) target = $region5
    $region4: #{trait_decoder_forward.1} parent=1 // pred_region
      _
    $region5: #{trait_decoder_forward.1} parent=1 // pred_fallthru
      _
    // Predicated region
    $region6: #{trait_decoder_forward.1} parent=1 // pred_check
      _
    $region7: #{trait_decoder_forward.1} parent=1 // pred_check_branch
      %17 = sbr.rel (0) target = $region9
    $region8: #{trait_decoder_forward.1} parent=1 // pred_region
      %s19 = ssub.s32 2048, 2048
      %20 = vsyncadd [#allocation3], %s19
      %s21 = sshll.u32 [#allocation2], 4
      %s22 = int_to_ptr.vmem [resolvable:$true] %s21
      %27 = dma.hbm_to_vmem [thread:$0]  %s1, 2048, %s22, [#allocation3], 256, 256, 16
    $region9: #{trait_decoder_forward.1} parent=1 // pred_fallthru
      _
    // Predicated region
    $region10: #{trait_decoder_forward.1} parent=1 // pred_check
      _
    $region11: #{trait_decoder_forward.1} parent=1 // pred_check_branch
      %29 = sbr.rel (0) target = $region13
    $region12: #{trait_decoder_forward.1} parent=1 // pred_region
      _
    $region13: #{trait_decoder_forward.1} parent=1 // pred_fallthru
      _
    // Predicated region
    $region14: #{trait_decoder_forward.1} parent=1 // pred_check
      _
    $region15: #{trait_decoder_forward.1} parent=1 // pred_check_branch
      %31 = sbr.rel (0) target = $region17
    $region16: #{trait_decoder_forward.1} parent=1 // pred_region
      %s33 = ssub.s32 8192, 8192
      %34 = vsyncadd [#allocation5], %s33
      %s35 = sshll.u32 [#allocation4], 4
      %s36 = int_to_ptr.vmem [resolvable:$true] %s35
      %41 = dma.hbm_to_vmem [thread:$0]  %s3, 8192, %s36, [#allocation5], 128, 128, 8
    $region17: #{trait_decoder_forward.1} parent=1 // pred_fallthru
      _
    // Predicated region
    $region18: #{trait_decoder_forward.1} parent=1 // pred_check
      _
    $region19: #{trait_decoder_forward.1} parent=1 // pred_check_branch
      %43 = sbr.rel (0) target = $region21
    $region20: #{trait_decoder_forward.1} parent=1 // pred_region
      _
    $region21: #{trait_decoder_forward.1} parent=1 // pred_fallthru
      _
    // Predicated region
    $region22: #{trait_decoder_forward.1} parent=1 // pred_check
      _
    $region23: #{trait_decoder_forward.1} parent=1 // pred_check_branch
      %45 = sbr.rel (0) target = $region25
    $region24: #{trait_decoder_forward.1} parent=1 // pred_region
      %s47 = ssub.s32 2048, 2048
      %48 = vsyncadd [#allocation5], %s47
      %s49 = sshll.u32 [#allocation6], 4
      %s50 = int_to_ptr.vmem [resolvable:$true] %s49
      %55 = dma.hbm_to_vmem [thread:$0]  %s5, 2048, %s50, [#allocation5], 64, 64, 4
    $region25: #{trait_decoder_forward.1} parent=1 // pred_fallthru
      _
    // Predicated region
    $region26: #{trait_decoder_forward.1} parent=1 // pred_check
      _
    $region27: #{trait_decoder_forward.1} parent=1 // pred_check_branch
      %57 = sbr.rel (0) target = $region29
    $region28: #{trait_decoder_forward.1} parent=1 // pred_region
      _
    $region29: #{trait_decoder_forward.1} parent=1 // pred_fallthru
      _
    // Predicated region
    $region30: #{trait_decoder_forward.1} parent=1 // pred_check
      _
    $region31: #{trait_decoder_forward.1} parent=1 // pred_check_branch
      %59 = sbr.rel (0) target = $region33
    $region32: #{trait_decoder_forward.1} parent=1 // pred_region
      %60 = dma.done [#allocation3], 2048
    $region33: #{trait_decoder_forward.1} parent=1 // pred_fallthru
      _
    // Predicated region
    $region34: #{trait_decoder_forward.1} parent=1 // pred_check
      _
    $region35: #{trait_decoder_forward.1} parent=1 // pred_check_branch
      %62 = sbr.rel (0) target = $region37
    $region36: #{trait_decoder_forward.1} parent=1 // pred_region
      %63 = dma.done [#allocation5], 8192
    $region37: #{trait_decoder_forward.1} parent=1 // pred_fallthru
      _
    // Predicated region
    $region38: #{trait_decoder_forward.1} parent=1 // pred_check
      _
    $region39: #{trait_decoder_forward.1} parent=1 // pred_check_branch
      %65 = sbr.rel (0) target = $region41
    $region40: #{trait_decoder_forward.1} parent=1 // pred_region
      %66 = dma.done [#allocation5], 2048
    $region41: #{trait_decoder_forward.1} parent=1 // pred_fallthru
      _
    %v68 = vld [vmem:[%s0] sm:$0xff]
    %v69 = vld [vmem:[%s0 + $0x8] sm:$0xff]
    %v70 = vpack.c.bf16 %v69, %v68
    %v71 = vld [vmem:[#allocation2] sm:$0xff]
    %v72 = vld [vmem:[#allocation2 + $0x8] sm:$0xff]
    %v73 = vld [vmem:[#allocation2 + $0x10] sm:$0xff]
    %v74 = vld [vmem:[#allocation2 + $0x18] sm:$0xff]
    %v75 = vld [vmem:[#allocation2 + $0x20] sm:$0xff]
    %v76 = vld [vmem:[#allocation2 + $0x28] sm:$0xff]
    %v77 = vld [vmem:[#allocation2 + $0x30] sm:$0xff]
    %v78 = vld [vmem:[#allocation2 + $0x38] sm:$0xff]
    %v79 = vld [vmem:[#allocation2 + $0x40] sm:$0xff]
    %v80 = vld [vmem:[#allocation2 + $0x48] sm:$0xff]
    %v81 = vld [vmem:[#allocation2 + $0x50] sm:$0xff]
    %v82 = vld [vmem:[#allocation2 + $0x58] sm:$0xff]
    %v83 = vld [vmem:[#allocation2 + $0x60] sm:$0xff]
    %v84 = vld [vmem:[#allocation2 + $0x68] sm:$0xff]
    %v85 = vld [vmem:[#allocation2 + $0x70] sm:$0xff]
    %v86 = vld [vmem:[#allocation2 + $0x78] sm:$0xff]
    %v87 = vld [vmem:[%s2] sm:$0xf]
    %v89 = vlaneseq
    %v90 = vshrl.u32 %v89, 7
    %v91 = vsub.s32 0, %v90
    %v92 = vrot.slane %v87, %v91
    %v93 = vlaneseq
    %v94 = vshrl.u32 %v93, 7
    %v95 = vsub.s32 1, %v94
    %v96 = vrot.slane %v87, %v95
    %v97 = vlaneseq
    %v98 = vshrl.u32 %v97, 7
    %v99 = vsub.s32 2, %v98
    %v100 = vrot.slane %v87, %v99
    %v101 = vlaneseq
    %v102 = vshrl.u32 %v101, 7
    %v103 = vsub.s32 3, %v102
    %v104 = vrot.slane %v87, %v103
    %v125 = vunpack.c.l.b16 %v71
    %v126 = vunpack.c.h.b16 %v71
    %v127 = vunpack.c.l.b16 %v72
    %v128 = vunpack.c.h.b16 %v72
    %v129 = vunpack.c.l.b16 %v73
    %v130 = vunpack.c.h.b16 %v73
    %v131 = vunpack.c.l.b16 %v74
    %v132 = vunpack.c.h.b16 %v74
    %v133 = vunpack.c.l.b16 %v75
    %v134 = vunpack.c.h.b16 %v75
    %v135 = vunpack.c.l.b16 %v76
    %v136 = vunpack.c.h.b16 %v76
    %v137 = vunpack.c.l.b16 %v77
    %v138 = vunpack.c.h.b16 %v77
    %v139 = vunpack.c.l.b16 %v78
    %v140 = vunpack.c.h.b16 %v78
    %v141 = vunpack.c.l.b16 %v79
    %v142 = vunpack.c.h.b16 %v79
    %v143 = vunpack.c.l.b16 %v80
    %v144 = vunpack.c.h.b16 %v80
    %v145 = vunpack.c.l.b16 %v81
    %v146 = vunpack.c.h.b16 %v81
    %v147 = vunpack.c.l.b16 %v82
    %v148 = vunpack.c.h.b16 %v82
    %v149 = vunpack.c.l.b16 %v83
    %v150 = vunpack.c.h.b16 %v83
    %v151 = vunpack.c.l.b16 %v84
    %v152 = vunpack.c.h.b16 %v84
    %v153 = vunpack.c.l.b16 %v85
    %v154 = vunpack.c.h.b16 %v85
    %v155 = vunpack.c.l.b16 %v86
    %v156 = vunpack.c.h.b16 %v86
    %v157 = vpack.c.b16 %v129, %v125
    %v158 = vpack.c.b16 %v130, %v126
    %v159 = vpack.c.b16 %v131, %v127
    %v160 = vpack.c.b16 %v132, %v128
    %v161 = vpack.c.b16 %v137, %v133
    %v162 = vpack.c.b16 %v138, %v134
    %v163 = vpack.c.b16 %v139, %v135
    %v164 = vpack.c.b16 %v140, %v136
    %v165 = vpack.c.b16 %v145, %v141
    %v166 = vpack.c.b16 %v146, %v142
    %v167 = vpack.c.b16 %v147, %v143
    %v168 = vpack.c.b16 %v148, %v144
    %v169 = vpack.c.b16 %v153, %v149
    %v170 = vpack.c.b16 %v154, %v150
    %v171 = vpack.c.b16 %v155, %v151
    %v172 = vpack.c.b16 %v156, %v152
    %vm189 = vcmask 523264
    %v191 = vsel %vm189, %v70, 0
    %193 = vmatprep.subr.bf16.mxu0 %v158
    %194 = vmatpush1.bf16.msra.mxu0 %v157
    %195 = vmatprep.subr.bf16.mxu0 %v162
    %196 = vmatpush1.bf16.msra.mxu0 %v161
    %197 = vmatprep.subr.bf16.mxu0 %v166
    %198 = vmatpush1.bf16.msra.mxu0 %v165
    %199 = vmatprep.subr.bf16.mxu0 %v170
    %200 = vmatpush1.bf16.msra.mxu0 %v169
    %201 = vmatprep.subr.bf16.mxu0 0
    %202 = vmatpush1.bf16.msra.mxu0 0
    %203 = vmatprep.subr.bf16.mxu0 0
    %204 = vmatpush1.bf16.msra.mxu0 0
    %205 = vmatprep.subr.bf16.mxu0 0
    %206 = vmatpush1.bf16.msra.mxu0 0
    %207 = vmatprep.subr.bf16.mxu0 0
    %208 = vmatpush1.bf16.msra.mxu0 0
    %209 = vmatprep.subr.bf16.mxu0 0
    %210 = vmatpush1.bf16.msra.mxu0 0
    %211 = vmatprep.subr.bf16.mxu0 0
    %212 = vmatpush1.bf16.msra.mxu0 0
    %213 = vmatprep.subr.bf16.mxu0 0
    %214 = vmatpush1.bf16.msra.mxu0 0
    %215 = vmatprep.subr.bf16.mxu0 0
    %216 = vmatpush1.bf16.msra.mxu0 0
    %217 = vmatprep.subr.bf16.mxu0 0
    %218 = vmatpush1.bf16.msra.mxu0 0
    %219 = vmatprep.subr.bf16.mxu0 0
    %220 = vmatpush1.bf16.msra.mxu0 0
    %221 = vmatprep.subr.bf16.mxu0 0
    %222 = vmatpush1.bf16.msra.mxu0 0
    %223 = vmatprep.subr.bf16.mxu0 0
    %224 = vmatpush1.bf16.msra.mxu0 0
    %225 = vmatprep.mubr.bf16.mxu0 0
    %226 = vmatmul.mubr.bf16.gmra.mrb[0].mxu0 %v191
    %v227 = vpop.f32.mrb[0].mxu0
    %v228 = vadd.f32 %v92, %v227
    %v229 = vpop.f32.mrb[0].mxu0
    %v230 = vadd.f32 %v96, %v229
    %v231 = vpop.f32.mrb[0].mxu0
    %v232 = vadd.f32 %v92, %v231
    %v233 = vpop.f32.mrb[0].mxu0
    %v234 = vadd.f32 %v96, %v233
    %235 = vdwg.mxu0
    %236 = vmatprep.subr.bf16.mxu0 %v160
    %237 = vmatpush1.bf16.msra.mxu0 %v159
    %238 = vmatprep.subr.bf16.mxu0 %v164
    %239 = vmatpush1.bf16.msra.mxu0 %v163
    %240 = vmatprep.subr.bf16.mxu0 %v168
    %241 = vmatpush1.bf16.msra.mxu0 %v167
    %242 = vmatprep.subr.bf16.mxu0 %v172
    %243 = vmatpush1.bf16.msra.mxu0 %v171
    %244 = vmatprep.subr.bf16.mxu0 0
    %245 = vmatpush1.bf16.msra.mxu0 0
    %246 = vmatprep.subr.bf16.mxu0 0
    %247 = vmatpush1.bf16.msra.mxu0 0
    %248 = vmatprep.subr.bf16.mxu0 0
    %249 = vmatpush1.bf16.msra.mxu0 0
    %250 = vmatprep.subr.bf16.mxu0 0
    %251 = vmatpush1.bf16.msra.mxu0 0
    %252 = vmatprep.subr.bf16.mxu0 0
    %253 = vmatpush1.bf16.msra.mxu0 0
    %254 = vmatprep.subr.bf16.mxu0 0
    %255 = vmatpush1.bf16.msra.mxu0 0
    %256 = vmatprep.subr.bf16.mxu0 0
    %257 = vmatpush1.bf16.msra.mxu0 0
    %258 = vmatprep.subr.bf16.mxu0 0
    %259 = vmatpush1.bf16.msra.mxu0 0
    %260 = vmatprep.subr.bf16.mxu0 0
    %261 = vmatpush1.bf16.msra.mxu0 0
    %262 = vmatprep.subr.bf16.mxu0 0
    %263 = vmatpush1.bf16.msra.mxu0 0
    %264 = vmatprep.subr.bf16.mxu0 0
    %265 = vmatpush1.bf16.msra.mxu0 0
    %266 = vmatprep.subr.bf16.mxu0 0
    %267 = vmatpush1.bf16.msra.mxu0 0
    %268 = vmatprep.mubr.bf16.mxu0 0
    %269 = vmatmul.mubr.bf16.gmra.mrb[0].mxu0 %v191
    %v270 = vpop.f32.mrb[0].mxu0
    %v271 = vadd.f32 %v100, %v270
    %v272 = vpop.f32.mrb[0].mxu0
    %v273 = vadd.f32 %v104, %v272
    %v274 = vpop.f32.mrb[0].mxu0
    %v275 = vadd.f32 %v100, %v274
    %v276 = vpop.f32.mrb[0].mxu0
    %v277 = vadd.f32 %v104, %v276
    %278 = vdwg.mxu0
    %v279 = vmul.f32 %v228, %v228
    %v280 = vmul.f32 %v230, %v230
    %v281 = vmul.f32 %v271, %v271
    %v282 = vmul.f32 %v273, %v273
    %v283 = vmul.f32 %v232, %v232
    %v284 = vmul.f32 %v234, %v234
    %v285 = vmul.f32 %v275, %v275
    %v286 = vmul.f32 %v277, %v277
    %v287 = vmul.f32 %v228, %v279
    %v288 = vmul.f32 %v230, %v280
    %v289 = vmul.f32 %v271, %v281
    %v290 = vmul.f32 %v273, %v282
    %v291 = vmul.f32 %v232, %v283
    %v292 = vmul.f32 %v234, %v284
    %v293 = vmul.f32 %v275, %v285
    %v294 = vmul.f32 %v277, %v286
    %v295 = vmul.f32 %v287, 0.044715
    %v296 = vmul.f32 %v288, 0.044715
    %v297 = vmul.f32 %v289, 0.044715
    %v298 = vmul.f32 %v290, 0.044715
    %v299 = vmul.f32 %v291, 0.044715
    %v300 = vmul.f32 %v292, 0.044715
    %v301 = vmul.f32 %v293, 0.044715
    %v302 = vmul.f32 %v294, 0.044715
    %v303 = vadd.f32 %v228, %v295
    %v304 = vadd.f32 %v230, %v296
    %v305 = vadd.f32 %v271, %v297
    %v306 = vadd.f32 %v273, %v298
    %v307 = vadd.f32 %v232, %v299
    %v308 = vadd.f32 %v234, %v300
    %v309 = vadd.f32 %v275, %v301
    %v310 = vadd.f32 %v277, %v302
    %v311 = vmul.f32 %v303, 0.7978846
    %v312 = vmul.f32 %v304, 0.7978846
    %v313 = vmul.f32 %v305, 0.7978846
    %v314 = vmul.f32 %v306, 0.7978846
    %v315 = vmul.f32 %v307, 0.7978846
    %v316 = vmul.f32 %v308, 0.7978846
    %v317 = vmul.f32 %v309, 0.7978846
    %v318 = vmul.f32 %v310, 0.7978846
    %v319 = vtanh.pop %v311
    %v320 = vtanh.pop %v312
    %v321 = vtanh.pop %v313
    %v322 = vtanh.pop %v314
    %v323 = vtanh.pop %v315
    %v324 = vtanh.pop %v316
    %v325 = vtanh.pop %v317
    %v326 = vtanh.pop %v318
    %v327 = vadd.f32 %v319, 1.0
    %v328 = vadd.f32 %v320, 1.0
    %v329 = vadd.f32 %v321, 1.0
    %v330 = vadd.f32 %v322, 1.0
    %v331 = vadd.f32 %v323, 1.0
    %v332 = vadd.f32 %v324, 1.0
    %v333 = vadd.f32 %v325, 1.0
    %v334 = vadd.f32 %v326, 1.0
    %v335 = vmul.f32 %v327, 0.5
    %v336 = vmul.f32 %v328, 0.5
    %v337 = vmul.f32 %v329, 0.5
    %v338 = vmul.f32 %v330, 0.5
    %v339 = vmul.f32 %v331, 0.5
    %v340 = vmul.f32 %v332, 0.5
    %v341 = vmul.f32 %v333, 0.5
    %v342 = vmul.f32 %v334, 0.5
    %v343 = vmul.f32 %v228, %v335
    %v344 = vmul.f32 %v230, %v336
    %v345 = vmul.f32 %v271, %v337
    %v346 = vmul.f32 %v273, %v338
    %v347 = vmul.f32 %v232, %v339
    %v348 = vmul.f32 %v234, %v340
    %v349 = vmul.f32 %v275, %v341
    %v350 = vmul.f32 %v277, %v342
    %v351 = vpack.c.bf16 %v347, %v343
    %v352 = vpack.c.bf16 %v348, %v344
    %v353 = vpack.c.bf16 %v349, %v345
    %v354 = vpack.c.bf16 %v350, %v346
    %v355 = vld [vmem:[#allocation4] sm:$0xff]
    %v356 = vld [vmem:[#allocation4 + $0x8] sm:$0xff]
    %v357 = vld [vmem:[#allocation4 + $0x10] sm:$0xff]
    %v358 = vld [vmem:[#allocation4 + $0x18] sm:$0xff]
    %v359 = vld [vmem:[#allocation4 + $0x20] sm:$0xff]
    %v360 = vld [vmem:[#allocation4 + $0x28] sm:$0xff]
    %v361 = vld [vmem:[#allocation4 + $0x30] sm:$0xff]
    %v362 = vld [vmem:[#allocation4 + $0x38] sm:$0xff]
    %v363 = vld [vmem:[#allocation4 + $0x40] sm:$0xff]
    %v364 = vld [vmem:[#allocation4 + $0x48] sm:$0xff]
    %v365 = vld [vmem:[#allocation4 + $0x50] sm:$0xff]
    %v366 = vld [vmem:[#allocation4 + $0x58] sm:$0xff]
    %v367 = vld [vmem:[#allocation4 + $0x60] sm:$0xff]
    %v368 = vld [vmem:[#allocation4 + $0x68] sm:$0xff]
    %v369 = vld [vmem:[#allocation4 + $0x70] sm:$0xff]
    %v370 = vld [vmem:[#allocation4 + $0x78] sm:$0xff]
    %v371 = vld [vmem:[#allocation4 + $0x80] sm:$0xff]
    %v372 = vld [vmem:[#allocation4 + $0x88] sm:$0xff]
    %v373 = vld [vmem:[#allocation4 + $0x90] sm:$0xff]
    %v374 = vld [vmem:[#allocation4 + $0x98] sm:$0xff]
    %v375 = vld [vmem:[#allocation4 + $0xa0] sm:$0xff]
    %v376 = vld [vmem:[#allocation4 + $0xa8] sm:$0xff]
    %v377 = vld [vmem:[#allocation4 + $0xb0] sm:$0xff]
    %v378 = vld [vmem:[#allocation4 + $0xb8] sm:$0xff]
    %v379 = vld [vmem:[#allocation4 + $0xc0] sm:$0xff]
    %v380 = vld [vmem:[#allocation4 + $0xc8] sm:$0xff]
    %v381 = vld [vmem:[#allocation4 + $0xd0] sm:$0xff]
    %v382 = vld [vmem:[#allocation4 + $0xd8] sm:$0xff]
    %v383 = vld [vmem:[#allocation4 + $0xe0] sm:$0xff]
    %v384 = vld [vmem:[#allocation4 + $0xe8] sm:$0xff]
    %v385 = vld [vmem:[#allocation4 + $0xf0] sm:$0xff]
    %v386 = vld [vmem:[#allocation4 + $0xf8] sm:$0xff]
    %v387 = vld [vmem:[#allocation4 + $0x100] sm:$0xff]
    %v388 = vld [vmem:[#allocation4 + $0x108] sm:$0xff]
    %v389 = vld [vmem:[#allocation4 + $0x110] sm:$0xff]
    %v390 = vld [vmem:[#allocation4 + $0x118] sm:$0xff]
    %v391 = vld [vmem:[#allocation4 + $0x120] sm:$0xff]
    %v392 = vld [vmem:[#allocation4 + $0x128] sm:$0xff]
    %v393 = vld [vmem:[#allocation4 + $0x130] sm:$0xff]
    %v394 = vld [vmem:[#allocation4 + $0x138] sm:$0xff]
    %v395 = vld [vmem:[#allocation4 + $0x140] sm:$0xff]
    %v396 = vld [vmem:[#allocation4 + $0x148] sm:$0xff]
    %v397 = vld [vmem:[#allocation4 + $0x150] sm:$0xff]
    %v398 = vld [vmem:[#allocation4 + $0x158] sm:$0xff]
    %v399 = vld [vmem:[#allocation4 + $0x160] sm:$0xff]
    %v400 = vld [vmem:[#allocation4 + $0x168] sm:$0xff]
    %v401 = vld [vmem:[#allocation4 + $0x170] sm:$0xff]
    %v402 = vld [vmem:[#allocation4 + $0x178] sm:$0xff]
    %v403 = vld [vmem:[#allocation4 + $0x180] sm:$0xff]
    %v404 = vld [vmem:[#allocation4 + $0x188] sm:$0xff]
    %v405 = vld [vmem:[#allocation4 + $0x190] sm:$0xff]
    %v406 = vld [vmem:[#allocation4 + $0x198] sm:$0xff]
    %v407 = vld [vmem:[#allocation4 + $0x1a0] sm:$0xff]
    %v408 = vld [vmem:[#allocation4 + $0x1a8] sm:$0xff]
    %v409 = vld [vmem:[#allocation4 + $0x1b0] sm:$0xff]
    %v410 = vld [vmem:[#allocation4 + $0x1b8] sm:$0xff]
    %v411 = vld [vmem:[#allocation4 + $0x1c0] sm:$0xff]
    %v412 = vld [vmem:[#allocation4 + $0x1c8] sm:$0xff]
    %v413 = vld [vmem:[#allocation4 + $0x1d0] sm:$0xff]
    %v414 = vld [vmem:[#allocation4 + $0x1d8] sm:$0xff]
    %v415 = vld [vmem:[#allocation4 + $0x1e0] sm:$0xff]
    %v416 = vld [vmem:[#allocation4 + $0x1e8] sm:$0xff]
    %v417 = vld [vmem:[#allocation4 + $0x1f0] sm:$0xff]
    %v418 = vld [vmem:[#allocation4 + $0x1f8] sm:$0xff]
    %v419 = vld [vmem:[%s4] sm:$0x3]
    %v421 = vlaneseq
    %v422 = vshrl.u32 %v421, 7
    %v423 = vsub.s32 0, %v422
    %v424 = vrot.slane %v419, %v423
    %v425 = vlaneseq
    %v426 = vshrl.u32 %v425, 7
    %v427 = vsub.s32 1, %v426
    %v428 = vrot.slane %v419, %v427
    %v495 = vunpack.c.l.b16 %v355
    %v496 = vunpack.c.h.b16 %v355
    %v497 = vunpack.c.l.b16 %v356
    %v498 = vunpack.c.h.b16 %v356
    %v499 = vunpack.c.l.b16 %v357
    %v500 = vunpack.c.h.b16 %v357
    %v501 = vunpack.c.l.b16 %v358
    %v502 = vunpack.c.h.b16 %v358
    %v503 = vunpack.c.l.b16 %v359
    %v504 = vunpack.c.h.b16 %v359
    %v505 = vunpack.c.l.b16 %v360
    %v506 = vunpack.c.h.b16 %v360
    %v507 = vunpack.c.l.b16 %v361
    %v508 = vunpack.c.h.b16 %v361
    %v509 = vunpack.c.l.b16 %v362
    %v510 = vunpack.c.h.b16 %v362
    %v511 = vunpack.c.l.b16 %v363
    %v512 = vunpack.c.h.b16 %v363
    %v513 = vunpack.c.l.b16 %v364
    %v514 = vunpack.c.h.b16 %v364
    %v515 = vunpack.c.l.b16 %v365
    %v516 = vunpack.c.h.b16 %v365
    %v517 = vunpack.c.l.b16 %v366
    %v518 = vunpack.c.h.b16 %v366
    %v519 = vunpack.c.l.b16 %v367
    %v520 = vunpack.c.h.b16 %v367
    %v521 = vunpack.c.l.b16 %v368
    %v522 = vunpack.c.h.b16 %v368
    %v523 = vunpack.c.l.b16 %v369
    %v524 = vunpack.c.h.b16 %v369
    %v525 = vunpack.c.l.b16 %v370
    %v526 = vunpack.c.h.b16 %v370
    %v527 = vunpack.c.l.b16 %v371
    %v528 = vunpack.c.h.b16 %v371
    %v529 = vunpack.c.l.b16 %v372
    %v530 = vunpack.c.h.b16 %v372
    %v531 = vunpack.c.l.b16 %v373
    %v532 = vunpack.c.h.b16 %v373
    %v533 = vunpack.c.l.b16 %v374
    %v534 = vunpack.c.h.b16 %v374
    %v535 = vunpack.c.l.b16 %v375
    %v536 = vunpack.c.h.b16 %v375
    %v537 = vunpack.c.l.b16 %v376
    %v538 = vunpack.c.h.b16 %v376
    %v539 = vunpack.c.l.b16 %v377
    %v540 = vunpack.c.h.b16 %v377
    %v541 = vunpack.c.l.b16 %v378
    %v542 = vunpack.c.h.b16 %v378
    %v543 = vunpack.c.l.b16 %v379
    %v544 = vunpack.c.h.b16 %v379
    %v545 = vunpack.c.l.b16 %v380
    %v546 = vunpack.c.h.b16 %v380
    %v547 = vunpack.c.l.b16 %v381
    %v548 = vunpack.c.h.b16 %v381
    %v549 = vunpack.c.l.b16 %v382
    %v550 = vunpack.c.h.b16 %v382
    %v551 = vunpack.c.l.b16 %v383
    %v552 = vunpack.c.h.b16 %v383
    %v553 = vunpack.c.l.b16 %v384
    %v554 = vunpack.c.h.b16 %v384
    %v555 = vunpack.c.l.b16 %v385
    %v556 = vunpack.c.h.b16 %v385
    %v557 = vunpack.c.l.b16 %v386
    %v558 = vunpack.c.h.b16 %v386
    %v559 = vunpack.c.l.b16 %v387
    %v560 = vunpack.c.h.b16 %v387
    %v561 = vunpack.c.l.b16 %v388
    %v562 = vunpack.c.h.b16 %v388
    %v563 = vunpack.c.l.b16 %v389
    %v564 = vunpack.c.h.b16 %v389
    %v565 = vunpack.c.l.b16 %v390
    %v566 = vunpack.c.h.b16 %v390
    %v567 = vunpack.c.l.b16 %v391
    %v568 = vunpack.c.h.b16 %v391
    %v569 = vunpack.c.l.b16 %v392
    %v570 = vunpack.c.h.b16 %v392
    %v571 = vunpack.c.l.b16 %v393
    %v572 = vunpack.c.h.b16 %v393
    %v573 = vunpack.c.l.b16 %v394
    %v574 = vunpack.c.h.b16 %v394
    %v575 = vunpack.c.l.b16 %v395
    %v576 = vunpack.c.h.b16 %v395
    %v577 = vunpack.c.l.b16 %v396
    %v578 = vunpack.c.h.b16 %v396
    %v579 = vunpack.c.l.b16 %v397
    %v580 = vunpack.c.h.b16 %v397
    %v581 = vunpack.c.l.b16 %v398
    %v582 = vunpack.c.h.b16 %v398
    %v583 = vunpack.c.l.b16 %v399
    %v584 = vunpack.c.h.b16 %v399
    %v585 = vunpack.c.l.b16 %v400
    %v586 = vunpack.c.h.b16 %v400
    %v587 = vunpack.c.l.b16 %v401
    %v588 = vunpack.c.h.b16 %v401
    %v589 = vunpack.c.l.b16 %v402
    %v590 = vunpack.c.h.b16 %v402
    %v591 = vunpack.c.l.b16 %v403
    %v592 = vunpack.c.h.b16 %v403
    %v593 = vunpack.c.l.b16 %v404
    %v594 = vunpack.c.h.b16 %v404
    %v595 = vunpack.c.l.b16 %v405
    %v596 = vunpack.c.h.b16 %v405
    %v597 = vunpack.c.l.b16 %v406
    %v598 = vunpack.c.h.b16 %v406
    %v599 = vunpack.c.l.b16 %v407
    %v600 = vunpack.c.h.b16 %v407
    %v601 = vunpack.c.l.b16 %v408
    %v602 = vunpack.c.h.b16 %v408
    %v603 = vunpack.c.l.b16 %v409
    %v604 = vunpack.c.h.b16 %v409
    %v605 = vunpack.c.l.b16 %v410
    %v606 = vunpack.c.h.b16 %v410
    %v607 = vunpack.c.l.b16 %v411
    %v608 = vunpack.c.h.b16 %v411
    %v609 = vunpack.c.l.b16 %v412
    %v610 = vunpack.c.h.b16 %v412
    %v611 = vunpack.c.l.b16 %v413
    %v612 = vunpack.c.h.b16 %v413
    %v613 = vunpack.c.l.b16 %v414
    %v614 = vunpack.c.h.b16 %v414
    %v615 = vunpack.c.l.b16 %v415
    %v616 = vunpack.c.h.b16 %v415
    %v617 = vunpack.c.l.b16 %v416
    %v618 = vunpack.c.h.b16 %v416
    %v619 = vunpack.c.l.b16 %v417
    %v620 = vunpack.c.h.b16 %v417
    %v621 = vunpack.c.l.b16 %v418
    %v622 = vunpack.c.h.b16 %v418
    %v623 = vpack.c.b16 %v497, %v495
    %v624 = vpack.c.b16 %v498, %v496
    %v625 = vpack.c.b16 %v501, %v499
    %v626 = vpack.c.b16 %v502, %v500
    %v627 = vpack.c.b16 %v505, %v503
    %v628 = vpack.c.b16 %v506, %v504
    %v629 = vpack.c.b16 %v509, %v507
    %v630 = vpack.c.b16 %v510, %v508
    %v631 = vpack.c.b16 %v513, %v511
    %v632 = vpack.c.b16 %v514, %v512
    %v633 = vpack.c.b16 %v517, %v515
    %v634 = vpack.c.b16 %v518, %v516
    %v635 = vpack.c.b16 %v521, %v519
    %v636 = vpack.c.b16 %v522, %v520
    %v637 = vpack.c.b16 %v525, %v523
    %v638 = vpack.c.b16 %v526, %v524
    %v639 = vpack.c.b16 %v529, %v527
    %v640 = vpack.c.b16 %v530, %v528
    %v641 = vpack.c.b16 %v533, %v531
    %v642 = vpack.c.b16 %v534, %v532
    %v643 = vpack.c.b16 %v537, %v535
    %v644 = vpack.c.b16 %v538, %v536
    %v645 = vpack.c.b16 %v541, %v539
    %v646 = vpack.c.b16 %v542, %v540
    %v647 = vpack.c.b16 %v545, %v543
    %v648 = vpack.c.b16 %v546, %v544
    %v649 = vpack.c.b16 %v549, %v547
    %v650 = vpack.c.b16 %v550, %v548
    %v651 = vpack.c.b16 %v553, %v551
    %v652 = vpack.c.b16 %v554, %v552
    %v653 = vpack.c.b16 %v557, %v555
    %v654 = vpack.c.b16 %v558, %v556
    %v655 = vpack.c.b16 %v561, %v559
    %v656 = vpack.c.b16 %v562, %v560
    %v657 = vpack.c.b16 %v565, %v563
    %v658 = vpack.c.b16 %v566, %v564
    %v659 = vpack.c.b16 %v569, %v567
    %v660 = vpack.c.b16 %v570, %v568
    %v661 = vpack.c.b16 %v573, %v571
    %v662 = vpack.c.b16 %v574, %v572
    %v663 = vpack.c.b16 %v577, %v575
    %v664 = vpack.c.b16 %v578, %v576
    %v665 = vpack.c.b16 %v581, %v579
    %v666 = vpack.c.b16 %v582, %v580
    %v667 = vpack.c.b16 %v585, %v583
    %v668 = vpack.c.b16 %v586, %v584
    %v669 = vpack.c.b16 %v589, %v587
    %v670 = vpack.c.b16 %v590, %v588
    %v671 = vpack.c.b16 %v593, %v591
    %v672 = vpack.c.b16 %v594, %v592
    %v673 = vpack.c.b16 %v597, %v595
    %v674 = vpack.c.b16 %v598, %v596
    %v675 = vpack.c.b16 %v601, %v599
    %v676 = vpack.c.b16 %v602, %v600
    %v677 = vpack.c.b16 %v605, %v603
    %v678 = vpack.c.b16 %v606, %v604
    %v679 = vpack.c.b16 %v609, %v607
    %v680 = vpack.c.b16 %v610, %v608
    %v681 = vpack.c.b16 %v613, %v611
    %v682 = vpack.c.b16 %v614, %v612
    %v683 = vpack.c.b16 %v617, %v615
    %v684 = vpack.c.b16 %v618, %v616
    %v685 = vpack.c.b16 %v621, %v619
    %v686 = vpack.c.b16 %v622, %v620
    %751 = vmatprep.subr.bf16.mxu0 %v624
    %752 = vmatpush1.bf16.msra.mxu0 %v623
    %753 = vmatprep.subr.bf16.mxu0 %v626
    %754 = vmatpush1.bf16.msra.mxu0 %v625
    %755 = vmatprep.subr.bf16.mxu0 %v628
    %756 = vmatpush1.bf16.msra.mxu0 %v627
    %757 = vmatprep.subr.bf16.mxu0 %v630
    %758 = vmatpush1.bf16.msra.mxu0 %v629
    %759 = vmatprep.subr.bf16.mxu0 %v632
    %760 = vmatpush1.bf16.msra.mxu0 %v631
    %761 = vmatprep.subr.bf16.mxu0 %v634
    %762 = vmatpush1.bf16.msra.mxu0 %v633
    %763 = vmatprep.subr.bf16.mxu0 %v636
    %764 = vmatpush1.bf16.msra.mxu0 %v635
    %765 = vmatprep.subr.bf16.mxu0 %v638
    %766 = vmatpush1.bf16.msra.mxu0 %v637
    %767 = vmatprep.subr.bf16.mxu0 %v640
    %768 = vmatpush1.bf16.msra.mxu0 %v639
    %769 = vmatprep.subr.bf16.mxu0 %v642
    %770 = vmatpush1.bf16.msra.mxu0 %v641
    %771 = vmatprep.subr.bf16.mxu0 %v644
    %772 = vmatpush1.bf16.msra.mxu0 %v643
    %773 = vmatprep.subr.bf16.mxu0 %v646
    %774 = vmatpush1.bf16.msra.mxu0 %v645
    %775 = vmatprep.subr.bf16.mxu0 %v648
    %776 = vmatpush1.bf16.msra.mxu0 %v647
    %777 = vmatprep.subr.bf16.mxu0 %v650
    %778 = vmatpush1.bf16.msra.mxu0 %v649
    %779 = vmatprep.subr.bf16.mxu0 %v652
    %780 = vmatpush1.bf16.msra.mxu0 %v651
    %781 = vmatprep.subr.bf16.mxu0 %v654
    %782 = vmatpush1.bf16.msra.mxu0 %v653
    %783 = vmatprep.mubr.bf16.mxu0 %v352
    %784 = vmatmul.mubr.bf16.gmra.mrb[0].mxu0 %v351
    %v785 = vpop.f32.mrb[0].mxu0
    %v786 = vadd.f32 %v424, %v785
    %v787 = vpop.f32.mrb[0].mxu0
    %v788 = vadd.f32 %v428, %v787
    %v789 = vpop.f32.mrb[0].mxu0
    %v790 = vadd.f32 %v424, %v789
    %v791 = vpop.f32.mrb[0].mxu0
    %v792 = vadd.f32 %v428, %v791
    %793 = vdwg.mxu0
    %794 = vmatprep.subr.bf16.mxu0 %v656
    %795 = vmatpush1.bf16.msra.mxu0 %v655
    %796 = vmatprep.subr.bf16.mxu0 %v658
    %797 = vmatpush1.bf16.msra.mxu0 %v657
    %798 = vmatprep.subr.bf16.mxu0 %v660
    %799 = vmatpush1.bf16.msra.mxu0 %v659
    %800 = vmatprep.subr.bf16.mxu0 %v662
    %801 = vmatpush1.bf16.msra.mxu0 %v661
    %802 = vmatprep.subr.bf16.mxu0 %v664
    %803 = vmatpush1.bf16.msra.mxu0 %v663
    %804 = vmatprep.subr.bf16.mxu0 %v666
    %805 = vmatpush1.bf16.msra.mxu0 %v665
    %806 = vmatprep.subr.bf16.mxu0 %v668
    %807 = vmatpush1.bf16.msra.mxu0 %v667
    %808 = vmatprep.subr.bf16.mxu0 %v670
    %809 = vmatpush1.bf16.msra.mxu0 %v669
    %810 = vmatprep.subr.bf16.mxu0 %v672
    %811 = vmatpush1.bf16.msra.mxu0 %v671
    %812 = vmatprep.subr.bf16.mxu0 %v674
    %813 = vmatpush1.bf16.msra.mxu0 %v673
    %814 = vmatprep.subr.bf16.mxu0 %v676
    %815 = vmatpush1.bf16.msra.mxu0 %v675
    %816 = vmatprep.subr.bf16.mxu0 %v678
    %817 = vmatpush1.bf16.msra.mxu0 %v677
    %818 = vmatprep.subr.bf16.mxu0 %v680
    %819 = vmatpush1.bf16.msra.mxu0 %v679
    %820 = vmatprep.subr.bf16.mxu0 %v682
    %821 = vmatpush1.bf16.msra.mxu0 %v681
    %822 = vmatprep.subr.bf16.mxu0 %v684
    %823 = vmatpush1.bf16.msra.mxu0 %v683
    %824 = vmatprep.subr.bf16.mxu0 %v686
    %825 = vmatpush1.bf16.msra.mxu0 %v685
    %826 = vmatprep.mubr.bf16.mxu0 %v354
    %827 = vmatmul.mubr.bf16.gmra.mrb[0].mxu0 %v353
    %v828 = vpop.f32.mrb[0].mxu0
    %v829 = vadd.f32 %v786, %v828
    %v830 = vpop.f32.mrb[0].mxu0
    %v831 = vadd.f32 %v788, %v830
    %v832 = vpop.f32.mrb[0].mxu0
    %v833 = vadd.f32 %v790, %v832
    %v834 = vpop.f32.mrb[0].mxu0
    %v835 = vadd.f32 %v792, %v834
    %836 = vdwg.mxu0
    %v837 = vmul.f32 %v829, %v829
    %v838 = vmul.f32 %v831, %v831
    %v839 = vmul.f32 %v833, %v833
    %v840 = vmul.f32 %v835, %v835
    %v841 = vmul.f32 %v829, %v837
    %v842 = vmul.f32 %v831, %v838
    %v843 = vmul.f32 %v833, %v839
    %v844 = vmul.f32 %v835, %v840
    %v845 = vmul.f32 %v841, 0.044715
    %v846 = vmul.f32 %v842, 0.044715
    %v847 = vmul.f32 %v843, 0.044715
    %v848 = vmul.f32 %v844, 0.044715
    %v849 = vadd.f32 %v829, %v845
    %v850 = vadd.f32 %v831, %v846
    %v851 = vadd.f32 %v833, %v847
    %v852 = vadd.f32 %v835, %v848
    %v853 = vmul.f32 %v849, 0.7978846
    %v854 = vmul.f32 %v850, 0.7978846
    %v855 = vmul.f32 %v851, 0.7978846
    %v856 = vmul.f32 %v852, 0.7978846
    %v857 = vtanh.pop %v853
    %v858 = vtanh.pop %v854
    %v859 = vtanh.pop %v855
    %v860 = vtanh.pop %v856
    %v861 = vadd.f32 %v857, 1.0
    %v862 = vadd.f32 %v858, 1.0
    %v863 = vadd.f32 %v859, 1.0
    %v864 = vadd.f32 %v860, 1.0
    %v865 = vmul.f32 %v861, 0.5
    %v866 = vmul.f32 %v862, 0.5
    %v867 = vmul.f32 %v863, 0.5
    %v868 = vmul.f32 %v864, 0.5
    %v869 = vmul.f32 %v829, %v865
    %v870 = vmul.f32 %v831, %v866
    %v871 = vmul.f32 %v833, %v867
    %v872 = vmul.f32 %v835, %v868
    %v873 = vpack.c.bf16 %v871, %v869
    %v874 = vpack.c.bf16 %v872, %v870
    %v875 = vld [vmem:[#allocation6] sm:$0xf]
    %v876 = vld [vmem:[#allocation6 + $0x4] sm:$0xf]
    %v877 = vld [vmem:[#allocation6 + $0x8] sm:$0xf]
    %v878 = vld [vmem:[#allocation6 + $0xc] sm:$0xf]
    %v879 = vld [vmem:[#allocation6 + $0x10] sm:$0xf]
    %v880 = vld [vmem:[#allocation6 + $0x14] sm:$0xf]
    %v881 = vld [vmem:[#allocation6 + $0x18] sm:$0xf]
    %v882 = vld [vmem:[#allocation6 + $0x1c] sm:$0xf]
    %v883 = vld [vmem:[#allocation6 + $0x20] sm:$0xf]
    %v884 = vld [vmem:[#allocation6 + $0x24] sm:$0xf]
    %v885 = vld [vmem:[#allocation6 + $0x28] sm:$0xf]
    %v886 = vld [vmem:[#allocation6 + $0x2c] sm:$0xf]
    %v887 = vld [vmem:[#allocation6 + $0x30] sm:$0xf]
    %v888 = vld [vmem:[#allocation6 + $0x34] sm:$0xf]
    %v889 = vld [vmem:[#allocation6 + $0x38] sm:$0xf]
    %v890 = vld [vmem:[#allocation6 + $0x3c] sm:$0xf]
    %v891 = vld [vmem:[#allocation6 + $0x40] sm:$0xf]
    %v892 = vld [vmem:[#allocation6 + $0x44] sm:$0xf]
    %v893 = vld [vmem:[#allocation6 + $0x48] sm:$0xf]
    %v894 = vld [vmem:[#allocation6 + $0x4c] sm:$0xf]
    %v895 = vld [vmem:[#allocation6 + $0x50] sm:$0xf]
    %v896 = vld [vmem:[#allocation6 + $0x54] sm:$0xf]
    %v897 = vld [vmem:[#allocation6 + $0x58] sm:$0xf]
    %v898 = vld [vmem:[#allocation6 + $0x5c] sm:$0xf]
    %v899 = vld [vmem:[#allocation6 + $0x60] sm:$0xf]
    %v900 = vld [vmem:[#allocation6 + $0x64] sm:$0xf]
    %v901 = vld [vmem:[#allocation6 + $0x68] sm:$0xf]
    %v902 = vld [vmem:[#allocation6 + $0x6c] sm:$0xf]
    %v903 = vld [vmem:[#allocation6 + $0x70] sm:$0xf]
    %v904 = vld [vmem:[#allocation6 + $0x74] sm:$0xf]
    %v905 = vld [vmem:[#allocation6 + $0x78] sm:$0xf]
    %v906 = vld [vmem:[#allocation6 + $0x7c] sm:$0xf]
    %v907 = vld [vmem:[%s6] sm:$0x1]
    %v909 = vlaneseq
    %v910 = vshrl.u32 %v909, 7
    %v911 = vsub.s32 0, %v910
    %v912 = vrot.slane %v907, %v911
    %v946 = vunpack.c.l.b16 %v875
    %v947 = vunpack.c.l.b16 %v876
    %v948 = vunpack.c.l.b16 %v877
    %v949 = vunpack.c.l.b16 %v878
    %v950 = vunpack.c.l.b16 %v879
    %v951 = vunpack.c.l.b16 %v880
    %v952 = vunpack.c.l.b16 %v881
    %v953 = vunpack.c.l.b16 %v882
    %v954 = vunpack.c.l.b16 %v883
    %v955 = vunpack.c.l.b16 %v884
    %v956 = vunpack.c.l.b16 %v885
    %v957 = vunpack.c.l.b16 %v886
    %v958 = vunpack.c.l.b16 %v887
    %v959 = vunpack.c.l.b16 %v888
    %v960 = vunpack.c.l.b16 %v889
    %v961 = vunpack.c.l.b16 %v890
    %v962 = vunpack.c.l.b16 %v891
    %v963 = vunpack.c.l.b16 %v892
    %v964 = vunpack.c.l.b16 %v893
    %v965 = vunpack.c.l.b16 %v894
    %v966 = vunpack.c.l.b16 %v895
    %v967 = vunpack.c.l.b16 %v896
    %v968 = vunpack.c.l.b16 %v897
    %v969 = vunpack.c.l.b16 %v898
    %v970 = vunpack.c.l.b16 %v899
    %v971 = vunpack.c.l.b16 %v900
    %v972 = vunpack.c.l.b16 %v901
    %v973 = vunpack.c.l.b16 %v902
    %v974 = vunpack.c.l.b16 %v903
    %v975 = vunpack.c.l.b16 %v904
    %v976 = vunpack.c.l.b16 %v905
    %v977 = vunpack.c.l.b16 %v906
    %v978 = vpack.c.b16 %v947, %v946
    %v979 = vpack.c.b16 %v949, %v948
    %v980 = vpack.c.b16 %v951, %v950
    %v981 = vpack.c.b16 %v953, %v952
    %v982 = vpack.c.b16 %v955, %v954
    %v983 = vpack.c.b16 %v957, %v956
    %v984 = vpack.c.b16 %v959, %v958
    %v985 = vpack.c.b16 %v961, %v960
    %v986 = vpack.c.b16 %v963, %v962
    %v987 = vpack.c.b16 %v965, %v964
    %v988 = vpack.c.b16 %v967, %v966
    %v989 = vpack.c.b16 %v969, %v968
    %v990 = vpack.c.b16 %v971, %v970
    %v991 = vpack.c.b16 %v973, %v972
    %v992 = vpack.c.b16 %v975, %v974
    %v993 = vpack.c.b16 %v977, %v976
    %1010 = vmatprep.subr.bf16.mxu0 0
    %1011 = vmatpush1.bf16.msra.mxu0 %v978
    %1012 = vmatprep.subr.bf16.mxu0 0
    %1013 = vmatpush1.bf16.msra.mxu0 %v979
    %1014 = vmatprep.subr.bf16.mxu0 0
    %1015 = vmatpush1.bf16.msra.mxu0 %v980
    %1016 = vmatprep.subr.bf16.mxu0 0
    %1017 = vmatpush1.bf16.msra.mxu0 %v981
    %1018 = vmatprep.subr.bf16.mxu0 0
    %1019 = vmatpush1.bf16.msra.mxu0 %v982
    %1020 = vmatprep.subr.bf16.mxu0 0
    %1021 = vmatpush1.bf16.msra.mxu0 %v983
    %1022 = vmatprep.subr.bf16.mxu0 0
    %1023 = vmatpush1.bf16.msra.mxu0 %v984
    %1024 = vmatprep.subr.bf16.mxu0 0
    %1025 = vmatpush1.bf16.msra.mxu0 %v985
    %1026 = vmatprep.subr.bf16.mxu0 0
    %1027 = vmatpush1.bf16.msra.mxu0 %v986
    %1028 = vmatprep.subr.bf16.mxu0 0
    %1029 = vmatpush1.bf16.msra.mxu0 %v987
    %1030 = vmatprep.subr.bf16.mxu0 0
    %1031 = vmatpush1.bf16.msra.mxu0 %v988
    %1032 = vmatprep.subr.bf16.mxu0 0
    %1033 = vmatpush1.bf16.msra.mxu0 %v989
    %1034 = vmatprep.subr.bf16.mxu0 0
    %1035 = vmatpush1.bf16.msra.mxu0 %v990
    %1036 = vmatprep.subr.bf16.mxu0 0
    %1037 = vmatpush1.bf16.msra.mxu0 %v991
    %1038 = vmatprep.subr.bf16.mxu0 0
    %1039 = vmatpush1.bf16.msra.mxu0 %v992
    %1040 = vmatprep.subr.bf16.mxu0 0
    %1041 = vmatpush1.bf16.msra.mxu0 %v993
    %1042 = vmatprep.mubr.bf16.mxu0 %v874
    %1043 = vmatmul.mubr.bf16.gmra.mrb[0].mxu0 %v873
    %v1044 = vpop.f32.mrb[0].mxu0
    %v1045 = vadd.f32 %v912, %v1044
    %v1046 = vpop.f32.mrb[0].mxu0
    %v1047 = vpop.f32.mrb[0].mxu0
    %v1048 = vadd.f32 %v912, %v1047
    %v1049 = vpop.f32.mrb[0].mxu0
    %1050 = vdwg.mxu0
    %v1051 = vxor.u32 %v1045, 2147483648
    %v1052 = vxor.u32 %v1048, 2147483648
    %v1053 = vmul.f32 %v1051, 1.442695
    %v1054 = vpow.pop %v1053
    %v1055 = vmul.f32 %v1052, 1.442695
    %v1056 = vpow.pop %v1055
    %v1057 = vadd.f32 %v1054, 1.0
    %v1058 = vadd.f32 %v1056, 1.0
    %v1059 = vrcp.pop %v1057
    %v1060 = vmul.f32 1.0, %v1059
    %v1061 = vrcp.pop %v1058
    %v1062 = vmul.f32 1.0, %v1061
    %1063 = vst [vmem:[%s7] sm:$0xff] %v1060
    %1064 = vst [vmem:[%s7 + $0x8] sm:$0xff] %v1062
    // Predicated region
    $region42: #{trait_decoder_forward.1} parent=1 // pred_check
      _
    $region43: #{trait_decoder_forward.1} parent=1 // pred_check_branch
      %1066 = sbr.rel (0) target = $region45
    $region44: #{trait_decoder_forward.1} parent=1 // pred_region
      _
    $region45: #{trait_decoder_forward.1} parent=1 // pred_fallthru
      _
    // Predicated region
    $region46: #{trait_decoder_forward.1} parent=1 // pred_check
      _
    $region47: #{trait_decoder_forward.1} parent=1 // pred_check_branch
      %1068 = sbr.rel (0) target = $region49
    $region48: #{trait_decoder_forward.1} parent=1 // pred_region
      _
    $region49: #{trait_decoder_forward.1} parent=1 // pred_fallthru
      _
    %1069 = vsyncpa [#allocation3], 1
    %1070 = vsyncpa [#allocation5], 1

</llo_original>
